<compile_context>
chip_gen: v7x
topology: tpu7x:2x2x1
jax: 0.10.0
libtpu: 0.0.40
codegen_flags: <defaults>
</compile_context>

<pallas_src>
import functools
import math

import jax
import jax.numpy as jnp
from jax.experimental import pallas as pl
from jax.experimental.pallas import tpu as pltpu

LANE = 128


def _round_up(x, m):
    return ((x + m - 1) // m) * m


def _pad2d(x, rows, cols):
    return jnp.pad(x, ((0, rows - x.shape[0]), (0, cols - x.shape[1])))


# ---------------------------------------------------------------------------
# Fused kernel: row-gather (one-hot MXU matmul) + fc matmul + ELU epilogue
#               [+ optional fused out_layer matmul].
# ---------------------------------------------------------------------------
def _diffgcn_fused_kernel(*refs, n_total, fuse_out):
    if fuse_out:
        ids_ref, feat_ref, w_fc_ref, w_out_ref, o_ref = refs
    else:
        ids_ref, feat_ref, w_fc_ref, o_ref = refs

    ids = ids_ref[...]                                    # (tm, 1) int32
    tm = ids.shape[0]

    # Fused row gather: one-hot(ids) @ feat on the MXU. Exactly one 1 per row,
    # so the gathered values are exact (no accumulation error, no HBM h_dst).
    col = jax.lax.broadcasted_iota(jnp.int32, (tm, n_total), 1)
    onehot = (col == ids).astype(feat_ref.dtype)          # (tm, n_total)
    x = jnp.dot(onehot, feat_ref[...],
                preferred_element_type=jnp.float32)       # (tm, Kp) f32

    # fc (no bias): bf16 (or f32) operands, f32 accumulation.
    h = jnp.dot(x.astype(w_fc_ref.dtype), w_fc_ref[...],
                preferred_element_type=jnp.float32)       # (tm, Hp) f32

    # ELU(alpha=1) epilogue in f32 (exp sits in the otherwise-idle EUP slot;
    # min(h,0) avoids inf for large positive h). expm1 would be marginally more
    # accurate near 0 but the difference is far below bf16 operand noise.
    h = jnp.where(h > 0, h, jnp.exp(jnp.minimum(h, 0.0)) - 1.0)

    if fuse_out:
        out = jnp.dot(h.astype(w_out_ref.dtype), w_out_ref[...],
                      preferred_element_type=jnp.float32)  # (tm, Op) f32
        o_ref[...] = out.astype(o_ref.dtype)
    else:
        o_ref[...] = h.astype(o_ref.dtype)


def _fused_layer(ids_pad, feat_pad, w_fc_pad, w_out_pad, *, tm):
    """One DiffGCN layer (gather + fc + ELU), optionally fused with out_layer."""
    m_pad = ids_pad.shape[0]
    n_total, kp = feat_pad.shape
    hp = w_fc_pad.shape[1]
    fuse_out = w_out_pad is not None
    np_ = w_out_pad.shape[1] if fuse_out else hp

    in_specs = [
        pl.BlockSpec((tm, 1), lambda m: (m, 0)),        # dst ids, per-M-tile
        pl.BlockSpec((n_total, kp), lambda m: (0, 0)),  # full feat table (resident)
        pl.BlockSpec((kp, hp), lambda m: (0, 0)),       # fc weight (resident)
    ]
    args = [ids_pad, feat_pad, w_fc_pad]
    if fuse_out:
        in_specs.append(pl.BlockSpec((hp, np_), lambda m: (0, 0)))
        args.append(w_out_pad)

    kernel = functools.partial(_diffgcn_fused_kernel, n_total=n_total,
                               fuse_out=fuse_out)
    # TODO(synk): for graphs whose padded feat table no longer fits VMEM, switch
    # the gather to a scalar-prefetched / DMA-based row gather and set
    # vmem_limit_bytes explicitly (re-derive against v7x's 64 MiB VMEM).
    return pl.pallas_call(
        kernel,
        out_shape=jax.ShapeDtypeStruct((m_pad, np_), jnp.float32),
        grid=(m_pad // tm,),
        in_specs=in_specs,
        out_specs=pl.BlockSpec((tm, np_), lambda m: (m, 0)),
        compiler_params=pltpu.CompilerParams(
            dimension_semantics=("parallel",)),
    )(*args)


# ---------------------------------------------------------------------------
# DiffGCN module (forward pass only, active code path).
# ---------------------------------------------------------------------------
def xavier_uniform(key, shape, gain=1.414):
    # PyTorch nn.Linear weight is [out, in]; fan_in = shape[1], fan_out = shape[0].
    fan_out, fan_in = shape
    bound = gain * math.sqrt(6.0 / (fan_in + fan_out))
    return jax.random.uniform(key, shape, jnp.float32, -bound, bound)


def init_diffgcn_params(key, in_dim, hidden_dim, out_dim, num_layer=1,
                        compute_dtype=jnp.bfloat16):
    """'fc'/'out': f32 [in, out] weights (reference semantics).
    '*_pad': lane-padded (to 128) compute_dtype copies fed to the kernel."""
    keys = jax.random.split(key, num_layer + 1)
    dims = [in_dim] + [hidden_dim] * num_layer
    hp = _round_up(hidden_dim, LANE)
    fc, fc_pad = [], []
    for i in range(num_layer):
        w = xavier_uniform(keys[i], (dims[i + 1], dims[i])).T     # [in, out]
        fc.append(w)
        fc_pad.append(_pad2d(w, _round_up(dims[i], LANE), hp).astype(compute_dtype))
    w_out = xavier_uniform(keys[-1], (out_dim, hidden_dim)).T      # [hid, out]
    out_pad = _pad2d(w_out, hp, _round_up(out_dim, LANE)).astype(compute_dtype)
    return {"fc": fc, "out": w_out, "fc_pad": fc_pad, "out_pad": out_pad,
            "out_dim": out_dim, "compute_dtype": compute_dtype}


def diffgcn_forward(params, dst_ids_per_layer, feat, *, tm_max=256):
    """feat: [N_total, in_dim] float; dst_ids_per_layer: list of int32 id arrays.
    With num_layer == 1 (module default) the whole forward is ONE pallas_call."""
    # TODO(synk): unused __init__ submodules (DiffAttention, GRU fusion) are not
    # exercised by the active forward and are intentionally not implemented.
    num_layer = len(params["fc_pad"])
    cdt = params["compute_dtype"]

    cur = feat.astype(jnp.float32)
    for i in range(num_layer):
        kp_i, _ = params["fc_pad"][i].shape
        # Pad feature dim to the lane-padded K and rows to a packing-friendly
        # multiple (zero rows/cols contribute nothing); cast to MXU dtype.
        feat_i = _pad2d(cur, _round_up(cur.shape[0], 16), kp_i).astype(cdt)

        ids = dst_ids_per_layer[i].astype(jnp.int32)
        m = ids.shape[0]
        tm = tm_max if m > tm_max else _round_up(m, 8)
        m_pad = _round_up(m, tm)
        ids_pad = jnp.pad(ids, (0, m_pad - m)).reshape(m_pad, 1)

        last = i == num_layer - 1
        out = _fused_layer(ids_pad, feat_i, params["fc_pad"][i],
                           params["out_pad"] if last else None, tm=tm)
        if last:
            return out[:m, :params["out_dim"]]
        cur = out[:m]   # padded hidden cols are ELU(0)=0 -> harmless downstream


# ---------------------------------------------------------------------------
# Plain-JAX references for correctness checks.
# ---------------------------------------------------------------------------
def diffgcn_forward_ref(params, dst_ids_per_layer, feat):
    """Full-f32 reference of the active PyTorch forward."""
    for i, w in enumerate(params["fc"]):
        h = jnp.take(feat, dst_ids_per_layer[i], axis=0).astype(jnp.float32) @ w
        feat = jnp.where(h > 0, h, jnp.exp(jnp.minimum(h, 0.0)) - 1.0)
    return feat @ params["out"]


def diffgcn_forward_mixed_ref(params, dst_ids_per_layer, feat):
    """Reference mirroring kernel numerics: bf16 MXU operands, f32 accum + ELU."""
    cdt = params["compute_dtype"]
    for i, w in enumerate(params["fc"]):
        h_dst = jnp.take(feat, dst_ids_per_layer[i], axis=0)
        h = jnp.dot(h_dst.astype(cdt), w.astype(cdt),
                    preferred_element_type=jnp.float32)
        feat = jnp.where(h > 0, h, jnp.exp(jnp.minimum(h, 0.0)) - 1.0)
    return jnp.dot(feat.astype(cdt), params["out"].astype(cdt),
                   preferred_element_type=jnp.float32)


if __name__ == "__main__":
    key = jax.random.PRNGKey(0)
    k_param, k_feat, k_idx = jax.random.split(key, 3)

    # Small synthetic problem (module default num_layer=1).
    in_dim, hidden_dim, out_dim, num_layer = 8, 32, 16, 1
    n_total_nodes, n_dst_nodes = 24, 16

    params = init_diffgcn_params(k_param, in_dim, hidden_dim, out_dim,
                                 num_layer, compute_dtype=jnp.bfloat16)

    feat = jax.random.normal(k_feat, (n_total_nodes, in_dim), jnp.float32)
    dst_ids = [
        jax.random.randint(k_idx, (n_dst_nodes,), 0, n_total_nodes, jnp.int32)
    ]

    out = diffgcn_forward(params, dst_ids, feat)
    out = jax.block_until_ready(out)
    assert out.shape == (n_dst_nodes, out_dim)

    # Tight check vs a reference mirroring the kernel's (bf16, f32-accum) numerics.
    mixed_ref = diffgcn_forward_mixed_ref(params, dst_ids, feat)
    assert jnp.allclose(out, mixed_ref, atol=2e-2, rtol=2e-2), (
        float(jnp.max(jnp.abs(out - mixed_ref))))

    # Loose semantic check vs the full-f32 reference (bf16 operand noise only).
    f32_ref = diffgcn_forward_ref(params, dst_ids, feat)
    assert jnp.allclose(out, f32_ref, atol=2.5e-1, rtol=1e-1), (
        float(jnp.max(jnp.abs(out - f32_ref))))

    print("KERNEL_OK")
</pallas_src>

<mosaic_0001>
module attributes {stable_mosaic.version = 11 : i64} {
  func.func @_diffgcn_fused_kernel(%arg0: i32, %arg1: memref<16x1xi32, #tpu.memory_space<vmem>>, %arg2: memref<32x128xbf16, #tpu.memory_space<vmem>>, %arg3: memref<128x128xbf16, #tpu.memory_space<vmem>>, %arg4: memref<128x128xbf16, #tpu.memory_space<vmem>>, %arg5: memref<16x128xf32, #tpu.memory_space<vmem>>) attributes {dimension_semantics = [#tpu.dimension_semantics<parallel>], iteration_bounds = array<i64: 1>, scalar_prefetch = 0 : i64, scratch_operands = 0 : i64, tpu.core_type = #tpu.core_type<tc>, window_params = [{transform_indices = @transform_0, window_bounds = array<i64: 16, 1>}, {pipeline_mode = #tpu.pipeline_mode<synchronous>, transform_indices = @transform_1, window_bounds = array<i64: 32, 128>}, {pipeline_mode = #tpu.pipeline_mode<synchronous>, transform_indices = @transform_2, window_bounds = array<i64: 128, 128>}, {pipeline_mode = #tpu.pipeline_mode<synchronous>, transform_indices = @transform_3, window_bounds = array<i64: 128, 128>}, {transform_indices = @transform_4, window_bounds = array<i64: 16, 128>}]} {
    %c0 = arith.constant 0 : index
    %c0_0 = arith.constant 0 : index
    %0 = vector.load %arg1[%c0, %c0_0] : memref<16x1xi32, #tpu.memory_space<vmem>>, vector<16x1xi32>
    %1 = tpu.iota {dimensions = array<i32: 1>} : vector<16x32xi32>
    %2 = vector.broadcast %0 : vector<16x1xi32> to vector<16x32xi32>
    %3 = arith.cmpi eq, %1, %2 : vector<16x32xi32>
    %4 = arith.extui %3 : vector<16x32xi1> to vector<16x32xi32>
    %5 = arith.sitofp %4 : vector<16x32xi32> to vector<16x32xf32>
    %6 = arith.truncf %5 : vector<16x32xf32> to vector<16x32xbf16>
    %c0_1 = arith.constant 0 : index
    %c0_2 = arith.constant 0 : index
    %7 = vector.load %arg2[%c0_1, %c0_2] : memref<32x128xbf16, #tpu.memory_space<vmem>>, vector<32x128xbf16>
    %cst = arith.constant dense<0.000000e+00> : vector<16x128xf32>
    %8 = tpu.matmul %6, %7, %cst {dimension_numbers = #tpu.dot_dimension_numbers<[1], [0], [0], [1], [0, 0, 1, 1], [], []>} : vector<16x32xbf16>, vector<32x128xbf16>, vector<16x128xf32> -> vector<16x128xf32>
    %9 = arith.truncf %8 : vector<16x128xf32> to vector<16x128xbf16>
    %c0_3 = arith.constant 0 : index
    %c0_4 = arith.constant 0 : index
    %10 = vector.load %arg3[%c0_3, %c0_4] : memref<128x128xbf16, #tpu.memory_space<vmem>>, vector<128x128xbf16>
    %cst_5 = arith.constant dense<0.000000e+00> : vector<16x128xf32>
    %11 = tpu.matmul %9, %10, %cst_5 {dimension_numbers = #tpu.dot_dimension_numbers<[1], [0], [0], [1], [0, 0, 1, 1], [], []>} : vector<16x128xbf16>, vector<128x128xbf16>, vector<16x128xf32> -> vector<16x128xf32>
    %cst_6 = arith.constant 0.000000e+00 : f32
    %12 = vector.broadcast %cst_6 : f32 to vector<16x128xf32>
    %13 = arith.cmpf ogt, %11, %12 : vector<16x128xf32>
    %cst_7 = arith.constant 0.000000e+00 : f32
    %14 = vector.broadcast %cst_7 : f32 to vector<16x128xf32>
    %15 = arith.minimumf %11, %14 : vector<16x128xf32>
    %16 = math.exp %15 : vector<16x128xf32>
    %cst_8 = arith.constant 1.000000e+00 : f32
    %17 = vector.broadcast %cst_8 : f32 to vector<16x128xf32>
    %18 = arith.subf %16, %17 : vector<16x128xf32>
    %19 = arith.select %13, %11, %18 : vector<16x128xi1>, vector<16x128xf32>
    %20 = arith.truncf %19 : vector<16x128xf32> to vector<16x128xbf16>
    %c0_9 = arith.constant 0 : index
    %c0_10 = arith.constant 0 : index
    %21 = vector.load %arg4[%c0_9, %c0_10] : memref<128x128xbf16, #tpu.memory_space<vmem>>, vector<128x128xbf16>
    %cst_11 = arith.constant dense<0.000000e+00> : vector<16x128xf32>
    %22 = tpu.matmul %20, %21, %cst_11 {dimension_numbers = #tpu.dot_dimension_numbers<[1], [0], [0], [1], [0, 0, 1, 1], [], []>} : vector<16x128xbf16>, vector<128x128xbf16>, vector<16x128xf32> -> vector<16x128xf32>
    %c0_12 = arith.constant 0 : index
    %c0_13 = arith.constant 0 : index
    %23 = vector.load %arg5[%c0_12, %c0_13] : memref<16x128xf32, #tpu.memory_space<vmem>>, vector<16x128xf32>
    tpu.vector_store %arg5[%c0_12, %c0_13], %22 {strides = array<i32>} : memref<16x128xf32, #tpu.memory_space<vmem>>, vector<16x128xf32>,
    return
  }
  func.func @transform_0(%arg0: i32) -> (i32, i32) {
    %c0_i32 = arith.constant 0 : i32
    %c0_i32_0 = arith.constant 0 : i32
    return %arg0, %c0_i32 : i32, i32
  }
  func.func @transform_1(%arg0: i32) -> (i32, i32) {
    %c0_i32 = arith.constant 0 : i32
    %c0_i32_0 = arith.constant 0 : i32
    %c0_i32_1 = arith.constant 0 : i32
    return %c0_i32, %c0_i32_0 : i32, i32
  }
  func.func @transform_2(%arg0: i32) -> (i32, i32) {
    %c0_i32 = arith.constant 0 : i32
    %c0_i32_0 = arith.constant 0 : i32
    %c0_i32_1 = arith.constant 0 : i32
    return %c0_i32, %c0_i32_0 : i32, i32
  }
  func.func @transform_3(%arg0: i32) -> (i32, i32) {
    %c0_i32 = arith.constant 0 : i32
    %c0_i32_0 = arith.constant 0 : i32
    %c0_i32_1 = arith.constant 0 : i32
    return %c0_i32, %c0_i32_0 : i32, i32
  }
  func.func @transform_4(%arg0: i32) -> (i32, i32) {
    %c0_i32 = arith.constant 0 : i32
    %c0_i32_0 = arith.constant 0 : i32
    return %arg0, %c0_i32 : i32, i32
  }
}

</mosaic_0001>

<llo_original>
// kernel: tpu_custom_call.1
$region0: #{tpu_custom_call.1}
  #allocation0 [shape = 'u32[]', space=smem, size = 0x4, offset = 0x4, fixed_abs, tag = 'smem constant byte address 0x4 - core index']
  #allocation1 [shape = 'u32[144,128]{1,0:T(1,128)}', space=vmem, size = 0x12000, scoped, tag = 'internal scratch']
  %s0 = inlined_call_operand.vmem [shape: s32[16,1], index: 0, kind: input, shape index: {}]
  %s1 = inlined_call_operand.vmem [shape: bf16[32,128], index: 1, kind: input, shape index: {}]
  %s2 = inlined_call_operand.hbm [shape: bf16[128,128], index: 2, kind: input, shape index: {}]
  %s3 = inlined_call_operand.hbm [shape: bf16[128,128], index: 3, kind: input, shape index: {}]
  %s4 = inlined_call_operand.hbm [shape: f32[16,128], index: 4, kind: output, shape index: {}]
  %s5 = sld [smem:[#allocation0]]
  $region34: #{tpu_custom_call.1} parent=0
    _
  %s7 = ssub.s32 1, %s5
  %s8 = scalar_select 0, %s7, %s5
  $region1: #{tpu_custom_call.1} parent=0
    #allocation2 [shape = 'u8[32768]{0}', space=vmem, size = 0x8000, scoped, tag = 'input window, operand 2, single buffered']
    #allocation3 [shape = 's32[1]{0}', space=sflag, size = 0x4, scoped, tag = 'scoped memory for tpu_custom_call.1']
    #allocation4 [shape = 's32[1]{0}', space=sflag, size = 0x4, scoped, tag = 'scoped memory for tpu_custom_call.1']
    #allocation5 [shape = 'u8[32768]{0}', space=vmem, size = 0x8000, scoped, tag = 'input window, operand 3, single buffered']
    #allocation6 [shape = 's32[1]{0}', space=sflag, size = 0x4, scoped, tag = 'scoped memory for tpu_custom_call.1']
    #allocation7 [shape = 'u8[8192]{0}', space=vmem, size = 0x2000, scoped, tag = 'output window, operand 0, single buffered']
    %9 = vsyncpa [#allocation3], 0
    %10 = vsyncpa [#allocation6], 0
    %11 = vsyncpa [#allocation4], 0
    // Predicated region
    $region2: #{tpu_custom_call.1} parent=1 // pred_check
      _
    $region3: #{tpu_custom_call.1} parent=1 // pred_check_branch
      %13 = sbr.rel (0) target = $region5
    $region4: #{tpu_custom_call.1} parent=1 // pred_region
      _
    $region5: #{tpu_custom_call.1} parent=1 // pred_fallthru
      _
    // Predicated region
    $region6: #{tpu_custom_call.1} parent=1 // pred_check
      _
    $region7: #{tpu_custom_call.1} parent=1 // pred_check_branch
      %15 = sbr.rel (0) target = $region9
    $region8: #{tpu_custom_call.1} parent=1 // pred_region
      _
    $region9: #{tpu_custom_call.1} parent=1 // pred_fallthru
      _
    // Predicated region
    $region10: #{tpu_custom_call.1} parent=1 // pred_check
      _
    $region11: #{tpu_custom_call.1} parent=1 // pred_check_branch
      %17 = sbr.rel (0) target = $region13
    $region12: #{tpu_custom_call.1} parent=1 // pred_region
      %s19 = ssub.s32 1024, 1024
      %20 = vsyncadd [#allocation3], %s19
      %s21 = sshll.u32 [#allocation2], 4
      %s22 = int_to_ptr.vmem [resolvable:$true] %s21
      %27 = dma.hbm_to_vmem [thread:$0]  %s2, 1024, %s22, [#allocation3], 64, 64, 4
    $region13: #{tpu_custom_call.1} parent=1 // pred_fallthru
      _
    // Predicated region
    $region14: #{tpu_custom_call.1} parent=1 // pred_check
      _
    $region15: #{tpu_custom_call.1} parent=1 // pred_check_branch
      %29 = sbr.rel (0) target = $region17
    $region16: #{tpu_custom_call.1} parent=1 // pred_region
      %s31 = ssub.s32 1024, 1024
      %32 = vsyncadd [#allocation6], %s31
      %s33 = sshll.u32 [#allocation5], 4
      %s34 = int_to_ptr.vmem [resolvable:$true] %s33
      %39 = dma.hbm_to_vmem [thread:$0]  %s3, 1024, %s34, [#allocation6], 64, 64, 4
    $region17: #{tpu_custom_call.1} parent=1 // pred_fallthru
      _
    // Predicated region
    $region18: #{tpu_custom_call.1} parent=1 // pred_check
      _
    $region19: #{tpu_custom_call.1} parent=1 // pred_check_branch
      %41 = sbr.rel (0) target = $region21
    $region20: #{tpu_custom_call.1} parent=1 // pred_region
      %42 = dma.done [#allocation3], 1024
    $region21: #{tpu_custom_call.1} parent=1 // pred_fallthru
      _
    // Predicated region
    $region22: #{tpu_custom_call.1} parent=1 // pred_check
      _
    $region23: #{tpu_custom_call.1} parent=1 // pred_check_branch
      %44 = sbr.rel (0) target = $region25
    $region24: #{tpu_custom_call.1} parent=1 // pred_region
      %45 = dma.done [#allocation6], 1024
    $region25: #{tpu_custom_call.1} parent=1 // pred_fallthru
      _
    %v47 = vld [vmem:[%s0] sm:$0xff]
    %v48 = vld [vmem:[%s0 + $0x8] sm:$0xff]
    %v49 = vlaneseq
    %v50 = vand.u32 %v49, 127
    %51 = vset.pattern.permute.xlu0 0
    %52 = vperm.xlu0 %51, %v47
    %v53 = vpop.permute.xlu0 %52
    %54 = vset.pattern.permute.xlu0 0
    %55 = vperm.xlu0 %54, %v48
    %v56 = vpop.permute.xlu0 %55
    %vm57 = vcmp.eq.s32.totalorder %v50, %v53
    %vm58 = vcmp.eq.s32.totalorder %v50, %v56
    %v59 = vsel %vm57, 1, 0
    %v60 = vsel %vm58, 1, 0
    %v61 = vcvt.s32.f32 %v59
    %v62 = vcvt.s32.f32 %v60
    %v63 = vpack.c.bf16 %v62, %v61
    %v64 = vld [vmem:[%s1] sm:$0xf]
    %v65 = vld [vmem:[%s1 + $0x4] sm:$0xf]
    %v66 = vld [vmem:[%s1 + $0x8] sm:$0xf]
    %v67 = vld [vmem:[%s1 + $0xc] sm:$0xf]
    %v72 = vunpack.c.l.b16 %v64
    %v73 = vunpack.c.l.b16 %v65
    %v74 = vunpack.c.l.b16 %v66
    %v75 = vunpack.c.l.b16 %v67
    %v76 = vpack.c.b16 %v73, %v72
    %v77 = vpack.c.b16 %v75, %v74
    %vm80 = vcmask 261120
    %v82 = vsel %vm80, %v63, 0
    %84 = vmatprep.subr.bf16.mxu0 0
    %85 = vmatpush1.bf16.msra.mxu0 %v76
    %86 = vmatprep.subr.bf16.mxu0 0
    %87 = vmatpush1.bf16.msra.mxu0 %v77
    %88 = vmatprep.subr.bf16.mxu0 0
    %89 = vmatpush1.bf16.msra.mxu0 0
    %90 = vmatprep.subr.bf16.mxu0 0
    %91 = vmatpush1.bf16.msra.mxu0 0
    %92 = vmatprep.subr.bf16.mxu0 0
    %93 = vmatpush1.bf16.msra.mxu0 0
    %94 = vmatprep.subr.bf16.mxu0 0
    %95 = vmatpush1.bf16.msra.mxu0 0
    %96 = vmatprep.subr.bf16.mxu0 0
    %97 = vmatpush1.bf16.msra.mxu0 0
    %98 = vmatprep.subr.bf16.mxu0 0
    %99 = vmatpush1.bf16.msra.mxu0 0
    %100 = vmatprep.subr.bf16.mxu0 0
    %101 = vmatpush1.bf16.msra.mxu0 0
    %102 = vmatprep.subr.bf16.mxu0 0
    %103 = vmatpush1.bf16.msra.mxu0 0
    %104 = vmatprep.subr.bf16.mxu0 0
    %105 = vmatpush1.bf16.msra.mxu0 0
    %106 = vmatprep.subr.bf16.mxu0 0
    %107 = vmatpush1.bf16.msra.mxu0 0
    %108 = vmatprep.subr.bf16.mxu0 0
    %109 = vmatpush1.bf16.msra.mxu0 0
    %110 = vmatprep.subr.bf16.mxu0 0
    %111 = vmatpush1.bf16.msra.mxu0 0
    %112 = vmatprep.subr.bf16.mxu0 0
    %113 = vmatpush1.bf16.msra.mxu0 0
    %114 = vmatprep.subr.bf16.mxu0 0
    %115 = vmatpush1.bf16.msra.mxu0 0
    %116 = vmatprep.mubr.bf16.mxu0 0
    %117 = vmatmul.mubr.bf16.gmra.mrb[0].mxu0 %v82
    %v118 = vpop.f32.mrb[0].mxu0
    %v119 = vadd.f32 0.0, %v118
    %v120 = vpop.f32.mrb[0].mxu0
    %v121 = vpop.f32.mrb[0].mxu0
    %v122 = vadd.f32 0.0, %v121
    %v123 = vpop.f32.mrb[0].mxu0
    %124 = vdwg.mxu0
    %v125 = vpack.c.bf16 %v122, %v119
    %v126 = vld [vmem:[#allocation2] sm:$0xf]
    %v127 = vld [vmem:[#allocation2 + $0x4] sm:$0xf]
    %v128 = vld [vmem:[#allocation2 + $0x8] sm:$0xf]
    %v129 = vld [vmem:[#allocation2 + $0xc] sm:$0xf]
    %v130 = vld [vmem:[#allocation2 + $0x10] sm:$0xf]
    %v131 = vld [vmem:[#allocation2 + $0x14] sm:$0xf]
    %v132 = vld [vmem:[#allocation2 + $0x18] sm:$0xf]
    %v133 = vld [vmem:[#allocation2 + $0x1c] sm:$0xf]
    %v134 = vld [vmem:[#allocation2 + $0x20] sm:$0xf]
    %v135 = vld [vmem:[#allocation2 + $0x24] sm:$0xf]
    %v136 = vld [vmem:[#allocation2 + $0x28] sm:$0xf]
    %v137 = vld [vmem:[#allocation2 + $0x2c] sm:$0xf]
    %v138 = vld [vmem:[#allocation2 + $0x30] sm:$0xf]
    %v139 = vld [vmem:[#allocation2 + $0x34] sm:$0xf]
    %v140 = vld [vmem:[#allocation2 + $0x38] sm:$0xf]
    %v141 = vld [vmem:[#allocation2 + $0x3c] sm:$0xf]
    %v158 = vunpack.c.l.b16 %v126
    %v159 = vunpack.c.l.b16 %v127
    %v160 = vunpack.c.l.b16 %v128
    %v161 = vunpack.c.l.b16 %v129
    %v162 = vunpack.c.l.b16 %v130
    %v163 = vunpack.c.l.b16 %v131
    %v164 = vunpack.c.l.b16 %v132
    %v165 = vunpack.c.l.b16 %v133
    %v166 = vunpack.c.l.b16 %v134
    %v167 = vunpack.c.l.b16 %v135
    %v168 = vunpack.c.l.b16 %v136
    %v169 = vunpack.c.l.b16 %v137
    %v170 = vunpack.c.l.b16 %v138
    %v171 = vunpack.c.l.b16 %v139
    %v172 = vunpack.c.l.b16 %v140
    %v173 = vunpack.c.l.b16 %v141
    %v174 = vpack.c.b16 %v159, %v158
    %v175 = vpack.c.b16 %v161, %v160
    %v176 = vpack.c.b16 %v163, %v162
    %v177 = vpack.c.b16 %v165, %v164
    %v178 = vpack.c.b16 %v167, %v166
    %v179 = vpack.c.b16 %v169, %v168
    %v180 = vpack.c.b16 %v171, %v170
    %v181 = vpack.c.b16 %v173, %v172
    %190 = vmatprep.subr.bf16.mxu0 0
    %191 = vmatpush1.bf16.msra.mxu0 %v174
    %192 = vmatprep.subr.bf16.mxu0 0
    %193 = vmatpush1.bf16.msra.mxu0 %v175
    %194 = vmatprep.subr.bf16.mxu0 0
    %195 = vmatpush1.bf16.msra.mxu0 %v176
    %196 = vmatprep.subr.bf16.mxu0 0
    %197 = vmatpush1.bf16.msra.mxu0 %v177
    %198 = vmatprep.subr.bf16.mxu0 0
    %199 = vmatpush1.bf16.msra.mxu0 %v178
    %200 = vmatprep.subr.bf16.mxu0 0
    %201 = vmatpush1.bf16.msra.mxu0 %v179
    %202 = vmatprep.subr.bf16.mxu0 0
    %203 = vmatpush1.bf16.msra.mxu0 %v180
    %204 = vmatprep.subr.bf16.mxu0 0
    %205 = vmatpush1.bf16.msra.mxu0 %v181
    %206 = vmatprep.subr.bf16.mxu0 0
    %207 = vmatpush1.bf16.msra.mxu0 0
    %208 = vmatprep.subr.bf16.mxu0 0
    %209 = vmatpush1.bf16.msra.mxu0 0
    %210 = vmatprep.subr.bf16.mxu0 0
    %211 = vmatpush1.bf16.msra.mxu0 0
    %212 = vmatprep.subr.bf16.mxu0 0
    %213 = vmatpush1.bf16.msra.mxu0 0
    %214 = vmatprep.subr.bf16.mxu0 0
    %215 = vmatpush1.bf16.msra.mxu0 0
    %216 = vmatprep.subr.bf16.mxu0 0
    %217 = vmatpush1.bf16.msra.mxu0 0
    %218 = vmatprep.subr.bf16.mxu0 0
    %219 = vmatpush1.bf16.msra.mxu0 0
    %220 = vmatprep.subr.bf16.mxu0 0
    %221 = vmatpush1.bf16.msra.mxu0 0
    %222 = vmatprep.mubr.bf16.mxu0 0
    %223 = vmatmul.mubr.bf16.gmra.mrb[0].mxu0 %v125
    %v224 = vpop.f32.mrb[0].mxu0
    %v225 = vadd.f32 0.0, %v224
    %v226 = vpop.f32.mrb[0].mxu0
    %v227 = vpop.f32.mrb[0].mxu0
    %v228 = vadd.f32 0.0, %v227
    %v229 = vpop.f32.mrb[0].mxu0
    %230 = vdwg.mxu0
    %vm231 = vcmp.gt.f32.partialorder %v225, 0.0
    %vm232 = vcmp.gt.f32.partialorder %v228, 0.0
    %v233 = vmin.f32 %v225, 0.0
    %v234 = vmin.f32 %v228, 0.0
    %v235 = vmul.f32 %v233, 1.442695
    %v236 = vpow.pop %v235
    %v237 = vmul.f32 %v234, 1.442695
    %v238 = vpow.pop %v237
    %v239 = vsub.f32 %v236, 1.0
    %v240 = vsub.f32 %v238, 1.0
    %v241 = vsel %vm231, %v225, %v239
    %v242 = vsel %vm232, %v228, %v240
    %v243 = vpack.c.bf16 %v242, %v241
    %v244 = vld [vmem:[#allocation5] sm:$0xf]
    %v245 = vld [vmem:[#allocation5 + $0x4] sm:$0xf]
    %v246 = vld [vmem:[#allocation5 + $0x8] sm:$0xf]
    %v247 = vld [vmem:[#allocation5 + $0xc] sm:$0xf]
    %v248 = vld [vmem:[#allocation5 + $0x10] sm:$0xf]
    %v249 = vld [vmem:[#allocation5 + $0x14] sm:$0xf]
    %v250 = vld [vmem:[#allocation5 + $0x18] sm:$0xf]
    %v251 = vld [vmem:[#allocation5 + $0x1c] sm:$0xf]
    %v252 = vld [vmem:[#allocation5 + $0x20] sm:$0xf]
    %v253 = vld [vmem:[#allocation5 + $0x24] sm:$0xf]
    %v254 = vld [vmem:[#allocation5 + $0x28] sm:$0xf]
    %v255 = vld [vmem:[#allocation5 + $0x2c] sm:$0xf]
    %v256 = vld [vmem:[#allocation5 + $0x30] sm:$0xf]
    %v257 = vld [vmem:[#allocation5 + $0x34] sm:$0xf]
    %v258 = vld [vmem:[#allocation5 + $0x38] sm:$0xf]
    %v259 = vld [vmem:[#allocation5 + $0x3c] sm:$0xf]
    %v276 = vunpack.c.l.b16 %v244
    %v277 = vunpack.c.l.b16 %v245
    %v278 = vunpack.c.l.b16 %v246
    %v279 = vunpack.c.l.b16 %v247
    %v280 = vunpack.c.l.b16 %v248
    %v281 = vunpack.c.l.b16 %v249
    %v282 = vunpack.c.l.b16 %v250
    %v283 = vunpack.c.l.b16 %v251
    %v284 = vunpack.c.l.b16 %v252
    %v285 = vunpack.c.l.b16 %v253
    %v286 = vunpack.c.l.b16 %v254
    %v287 = vunpack.c.l.b16 %v255
    %v288 = vunpack.c.l.b16 %v256
    %v289 = vunpack.c.l.b16 %v257
    %v290 = vunpack.c.l.b16 %v258
    %v291 = vunpack.c.l.b16 %v259
    %v292 = vpack.c.b16 %v277, %v276
    %v293 = vpack.c.b16 %v279, %v278
    %v294 = vpack.c.b16 %v281, %v280
    %v295 = vpack.c.b16 %v283, %v282
    %v296 = vpack.c.b16 %v285, %v284
    %v297 = vpack.c.b16 %v287, %v286
    %v298 = vpack.c.b16 %v289, %v288
    %v299 = vpack.c.b16 %v291, %v290
    %308 = vmatprep.subr.bf16.mxu0 0
    %309 = vmatpush1.bf16.msra.mxu0 %v292
    %310 = vmatprep.subr.bf16.mxu0 0
    %311 = vmatpush1.bf16.msra.mxu0 %v293
    %312 = vmatprep.subr.bf16.mxu0 0
    %313 = vmatpush1.bf16.msra.mxu0 %v294
    %314 = vmatprep.subr.bf16.mxu0 0
    %315 = vmatpush1.bf16.msra.mxu0 %v295
    %316 = vmatprep.subr.bf16.mxu0 0
    %317 = vmatpush1.bf16.msra.mxu0 %v296
    %318 = vmatprep.subr.bf16.mxu0 0
    %319 = vmatpush1.bf16.msra.mxu0 %v297
    %320 = vmatprep.subr.bf16.mxu0 0
    %321 = vmatpush1.bf16.msra.mxu0 %v298
    %322 = vmatprep.subr.bf16.mxu0 0
    %323 = vmatpush1.bf16.msra.mxu0 %v299
    %324 = vmatprep.subr.bf16.mxu0 0
    %325 = vmatpush1.bf16.msra.mxu0 0
    %326 = vmatprep.subr.bf16.mxu0 0
    %327 = vmatpush1.bf16.msra.mxu0 0
    %328 = vmatprep.subr.bf16.mxu0 0
    %329 = vmatpush1.bf16.msra.mxu0 0
    %330 = vmatprep.subr.bf16.mxu0 0
    %331 = vmatpush1.bf16.msra.mxu0 0
    %332 = vmatprep.subr.bf16.mxu0 0
    %333 = vmatpush1.bf16.msra.mxu0 0
    %334 = vmatprep.subr.bf16.mxu0 0
    %335 = vmatpush1.bf16.msra.mxu0 0
    %336 = vmatprep.subr.bf16.mxu0 0
    %337 = vmatpush1.bf16.msra.mxu0 0
    %338 = vmatprep.subr.bf16.mxu0 0
    %339 = vmatpush1.bf16.msra.mxu0 0
    %340 = vmatprep.mubr.bf16.mxu0 0
    %341 = vmatmul.mubr.bf16.gmra.mrb[0].mxu0 %v243
    %v342 = vpop.f32.mrb[0].mxu0
    %v343 = vadd.f32 0.0, %v342
    %v344 = vpop.f32.mrb[0].mxu0
    %v345 = vpop.f32.mrb[0].mxu0
    %v346 = vadd.f32 0.0, %v345
    %v347 = vpop.f32.mrb[0].mxu0
    %348 = vdwg.mxu0
    %349 = vst [vmem:[#allocation7] sm:$0xff] %v343
    %350 = vst [vmem:[#allocation7 + $0x8] sm:$0xff] %v346
    // Predicated region
    $region26: #{tpu_custom_call.1} parent=1 // pred_check
      _
    $region27: #{tpu_custom_call.1} parent=1 // pred_check_branch
      %352 = sbr.rel (0) target = $region29
    $region28: #{tpu_custom_call.1} parent=1 // pred_region
      %s354 = ssub.s32 256, 256
      %355 = vsyncadd [#allocation4], %s354
      %s356 = sshll.u32 [#allocation7], 4
      %s357 = int_to_ptr.vmem [resolvable:$true] %s356
      %362 = dma.vmem_to_hbm [thread:$0]  %s357, 256, %s4, [#allocation4], 128, 128, 8
    $region29: #{tpu_custom_call.1} parent=1 // pred_fallthru
      _
    // Predicated region
    $region30: #{tpu_custom_call.1} parent=1 // pred_check
      _
    $region31: #{tpu_custom_call.1} parent=1 // pred_check_branch
      %364 = sbr.rel (0) target = $region33
    $region32: #{tpu_custom_call.1} parent=1 // pred_region
      %365 = dma.done [#allocation4], 256
    $region33: #{tpu_custom_call.1} parent=1 // pred_fallthru
      _
    %366 = vsyncpa [#allocation3], 1
    %367 = vsyncpa [#allocation6], 1
    %368 = vsyncpa [#allocation4], 1

</llo_original>
